<compile_context>
chip_gen: v7x
topology: tpu7x:2x2x1
jax: 0.10.0
libtpu: 0.0.40
codegen_flags: <defaults>
</compile_context>

<pallas_src>
import jax
import jax.numpy as jnp
from jax.experimental import pallas as pl
from jax.experimental.pallas import tpu as pltpu


# --------------------------------------------------------------------------- #
# Kernel
# --------------------------------------------------------------------------- #
def gate_assort_kernel(uti_ref, ass_ref,
                       w1_ref, b1_ref,
                       w2_ref, b2_ref,
                       w3_ref, b3_ref,
                       out_ref):
    # uti/ass/out tiles: [TR, L] f32, L = pack * input_dim (lane-dense, 128).
    uti = uti_ref[...]
    ass = ass_ref[...]

    # input_ = uti.mul(ass)  (f32 elementwise; only MXU operands go to bf16)
    x = (uti * ass).astype(jnp.bfloat16)

    # Linear(input_dim, width) + ReLU   (block-diagonal packed weights)
    h = jnp.dot(x, w1_ref[...], preferred_element_type=jnp.float32) + b1_ref[...]
    h = jnp.maximum(h, 0.0).astype(jnp.bfloat16)

    # Linear(width, width) + ReLU
    h = jnp.dot(h, w2_ref[...], preferred_element_type=jnp.float32) + b2_ref[...]
    h = jnp.maximum(h, 0.0).astype(jnp.bfloat16)

    # Linear(width, input_dim)
    score = jnp.dot(h, w3_ref[...], preferred_element_type=jnp.float32) + b3_ref[...]

    # score = score.mul(ass); score[score == 0] = -1e20
    score = score * ass
    score = jnp.where(score == 0.0, jnp.float32(-1e20), score)
    out_ref[...] = score.astype(out_ref.dtype)


# --------------------------------------------------------------------------- #
# Wrapper-side packing (done once per parameter set)
# --------------------------------------------------------------------------- #
def _pack_factor(input_dim):
    """How many batch rows get packed into one 128-lane wide row."""
    if input_dim < 128 and 128 % input_dim == 0:
        return 128 // input_dim
    return 1


def pack_params(params, input_dim):
    """Block-diagonal bf16 weights / tiled f32 biases for the lane-dense layout."""
    pack = _pack_factor(input_dim)
    eye = jnp.eye(pack, dtype=jnp.float32)
    blk = lambda w: jnp.kron(eye, w).astype(jnp.bfloat16)       # (in*p, out*p)
    rep = lambda b: jnp.tile(b, (1, pack)).astype(jnp.float32)  # (1, out*p)
    return {
        "w1": blk(params["w1"]), "b1": rep(params["b1"]),
        "w2": blk(params["w2"]), "b2": rep(params["b2"]),
        "w3": blk(params["w3"]), "b3": rep(params["b3"]),
    }


def _choose_tr(rows, block_rows):
    """Packed-row tile size.

    Prefer large tiles (the kernel is HBM-bandwidth bound, so per-step overhead
    must be amortized), but keep at least 2 grid steps when the batch is large
    enough so both of v7x's TensorCores get work under
    dimension_semantics=("parallel",).
    """
    if rows <= 8:
        return max(rows, 1)           # one tiny full-array block
    tr = min(block_rows, rows)
    if tr == rows:                    # would collapse to a single grid step
        tr = max(8, (rows // 2) // 8 * 8 or 8)
    return tr


def _resident_spec(arr):
    """Full-shape, VMEM-resident parameter block; single-buffered (constant
    index_map => DMA'd exactly once)."""
    try:
        return pl.BlockSpec(arr.shape, lambda i: (0, 0),
                            pipeline_mode=pl.Buffered(1))
    except TypeError:  # older BlockSpec signature without pipeline_mode
        return pl.BlockSpec(arr.shape, lambda i: (0, 0))


def gate_assort_net(uti, ass, packed, *, block_rows=2048):
    """uti, ass: [B, input_dim] float32.  packed: output of pack_params.

    block_rows is the number of *packed* (128-lane) rows per grid step.
    2048 is a good v5e/v6e default (~3 MiB/step of HBM traffic, ~6.5 MiB VMEM);
    on v7x larger values (4096-8192) recover a bit more of its 3.2 TB/s roof
    (set vmem_limit_bytes accordingly if you go past ~5-6k rows).
    """
    B, input_dim = uti.shape
    pack = _pack_factor(input_dim)

    # Pad the batch to a multiple of `pack`; padded rows have ass == 0 so they
    # come out as exactly -1e20 and are sliced away below.
    Bp = ((B + pack - 1) // pack) * pack
    if Bp != B:
        uti = jnp.pad(uti, ((0, Bp - B), (0, 0)))
        ass = jnp.pad(ass, ((0, Bp - B), (0, 0)))

    rows, L = Bp // pack, input_dim * pack
    uti_w = uti.reshape(rows, L)   # free: identical row-major memory
    ass_w = ass.reshape(rows, L)

    # Tile selection + padding so the grid divides evenly (no partial block,
    # no masked sublane stores, no reads of unspecified pad data).
    tr = _choose_tr(rows, block_rows)
    n_blocks = pl.cdiv(rows, tr)
    rows_p = n_blocks * tr
    if rows_p != rows:
        uti_w = jnp.pad(uti_w, ((0, rows_p - rows), (0, 0)))
        ass_w = jnp.pad(ass_w, ((0, rows_p - rows), (0, 0)))
    grid = (n_blocks,)

    data_spec = pl.BlockSpec((tr, L), lambda i: (i, 0))

    w1, b1 = packed["w1"], packed["b1"]
    w2, b2 = packed["w2"], packed["b2"]
    w3, b3 = packed["w3"], packed["b3"]
    Wp = w1.shape[1]  # packed hidden width

    # Accurate cost hint: 3 f32 data streams + bf16 weights + f32 biases; packed
    # matmul FLOPs only (elementwise is negligible).
    matmul_flops = 2 * rows_p * (L * Wp + Wp * Wp + Wp * L)
    bytes_accessed = (3 * rows_p * L * 4
                      + (L * Wp + Wp * Wp + Wp * L) * 2
                      + (Wp + Wp + L) * 4)
    cost = pl.CostEstimate(flops=int(matmul_flops),
                           transcendentals=0,
                           bytes_accessed=int(bytes_accessed))

    out = pl.pallas_call(
        gate_assort_kernel,
        out_shape=jax.ShapeDtypeStruct((rows_p, L), jnp.float32),
        grid=grid,
        in_specs=[data_spec, data_spec,
                  _resident_spec(w1), _resident_spec(b1),
                  _resident_spec(w2), _resident_spec(b2),
                  _resident_spec(w3), _resident_spec(b3)],
        out_specs=data_spec,
        compiler_params=pltpu.CompilerParams(
            dimension_semantics=("parallel",)),
        cost_estimate=cost,
    )(uti_w, ass_w, w1, b1, w2, b2, w3, b3)

    return out.reshape(rows_p * pack, input_dim)[:B]


# --------------------------------------------------------------------------- #
# Parameter init + references
# --------------------------------------------------------------------------- #
def init_params(key, input_dim, depth, width):
    """nn.Linear-shaped params (stored pre-transposed to (in, out)); depth=3 stack:
    Linear(input_dim, width) -> ReLU -> Linear(width, width) -> ReLU -> Linear(width, input_dim)."""
    assert depth == 3, "this script instantiates the depth=3 configuration"
    k1, k2, k3, k4, k5, k6 = jax.random.split(key, 6)

    def uniform(k, shape, fan_in):
        bound = 1.0 / jnp.sqrt(fan_in)
        return jax.random.uniform(k, shape, jnp.float32, -bound, bound)

    return {
        "w1": uniform(k1, (input_dim, width), input_dim),
        "b1": uniform(k2, (1, width), input_dim),
        "w2": uniform(k3, (width, width), width),
        "b2": uniform(k4, (1, width), width),
        "w3": uniform(k5, (width, input_dim), width),
        "b3": uniform(k6, (1, input_dim), width),
    }


def reference_f32(uti, ass, params):
    """Pure-f32 reference of the PyTorch forward."""
    x = uti * ass
    h = jnp.maximum(x @ params["w1"] + params["b1"], 0.0)
    h = jnp.maximum(h @ params["w2"] + params["b2"], 0.0)
    s = (h @ params["w3"] + params["b3"]) * ass
    return jnp.where(s == 0.0, -1e20, s)


def reference_bf16(uti, ass, params):
    """Reference mirroring the kernel's bf16 matmul operands (f32 accumulation)."""
    bf = jnp.bfloat16
    dot = lambda a, w: jnp.dot(a.astype(bf), w.astype(bf),
                               preferred_element_type=jnp.float32)
    x = uti * ass
    h = jnp.maximum(dot(x, params["w1"]) + params["b1"], 0.0)
    h = jnp.maximum(dot(h, params["w2"]) + params["b2"], 0.0)
    s = (dot(h, params["w3"]) + params["b3"]) * ass
    return jnp.where(s == 0.0, -1e20, s)


# --------------------------------------------------------------------------- #
# Demo / self-test
# --------------------------------------------------------------------------- #
if __name__ == "__main__":
    key = jax.random.PRNGKey(0)
    k_uti, k_ass, k_p = jax.random.split(key, 3)

    batch, input_dim, depth, width = 8, 16, 3, 32

    uti = jax.random.normal(k_uti, (batch, input_dim), jnp.float32)
    # assortment mask: 0/1 indicator (exercises the score==0 -> -1e20 path)
    ass = (jax.random.uniform(k_ass, (batch, input_dim)) > 0.3).astype(jnp.float32)

    params = init_params(k_p, input_dim, depth, width)
    packed = pack_params(params, input_dim)

    out = gate_assort_net(uti, ass, packed)
    out = jax.block_until_ready(out)

    assert out.shape == (batch, input_dim)
    # Tight check against a reference that mirrors the kernel's bf16 MXU operands.
    ref_bf = reference_bf16(uti, ass, params)
    assert jnp.allclose(out, ref_bf, rtol=1e-2, atol=1e-2), "mismatch vs bf16 reference"
    # Looser sanity check against the pure-f32 PyTorch-semantics reference
    # (differences come only from bf16 operand rounding on the MXU).
    ref_32 = reference_f32(uti, ass, params)
    assert jnp.allclose(out, ref_32, rtol=1e-1, atol=1e-1), "mismatch vs f32 reference"

    print("KERNEL_OK")
</pallas_src>

<mosaic_0001>
module attributes {stable_mosaic.version = 11 : i64} {
  func.func @gate_assort_kernel(%arg0: i32, %arg1: memref<1x128xf32, #tpu.memory_space<vmem>>, %arg2: memref<1x128xf32, #tpu.memory_space<vmem>>, %arg3: memref<128x256xbf16, #tpu.memory_space<vmem>>, %arg4: memref<1x256xf32, #tpu.memory_space<vmem>>, %arg5: memref<256x256xbf16, #tpu.memory_space<vmem>>, %arg6: memref<1x256xf32, #tpu.memory_space<vmem>>, %arg7: memref<256x128xbf16, #tpu.memory_space<vmem>>, %arg8: memref<1x128xf32, #tpu.memory_space<vmem>>, %arg9: memref<1x128xf32, #tpu.memory_space<vmem>>) attributes {dimension_semantics = [#tpu.dimension_semantics<parallel>], iteration_bounds = array<i64: 1>, scalar_prefetch = 0 : i64, scratch_operands = 0 : i64, tpu.core_type = #tpu.core_type<tc>, window_params = [{transform_indices = @transform_0, window_bounds = array<i64: 1, 128>}, {transform_indices = @transform_1, window_bounds = array<i64: 1, 128>}, {pipeline_mode = #tpu.pipeline_mode<synchronous>, transform_indices = @transform_2, window_bounds = array<i64: 128, 256>}, {pipeline_mode = #tpu.pipeline_mode<synchronous>, transform_indices = @transform_3, window_bounds = array<i64: 1, 256>}, {pipeline_mode = #tpu.pipeline_mode<synchronous>, transform_indices = @transform_4, window_bounds = array<i64: 256, 256>}, {pipeline_mode = #tpu.pipeline_mode<synchronous>, transform_indices = @transform_5, window_bounds = array<i64: 1, 256>}, {pipeline_mode = #tpu.pipeline_mode<synchronous>, transform_indices = @transform_6, window_bounds = array<i64: 256, 128>}, {pipeline_mode = #tpu.pipeline_mode<synchronous>, transform_indices = @transform_7, window_bounds = array<i64: 1, 128>}, {transform_indices = @transform_8, window_bounds = array<i64: 1, 128>}]} {
    %c0 = arith.constant 0 : index
    %c0_0 = arith.constant 0 : index
    %0 = vector.load %arg1[%c0, %c0_0] : memref<1x128xf32, #tpu.memory_space<vmem>>, vector<1x128xf32>
    %c0_1 = arith.constant 0 : index
    %c0_2 = arith.constant 0 : index
    %1 = vector.load %arg2[%c0_1, %c0_2] : memref<1x128xf32, #tpu.memory_space<vmem>>, vector<1x128xf32>
    %2 = arith.mulf %0, %1 : vector<1x128xf32>
    %3 = arith.truncf %2 : vector<1x128xf32> to vector<1x128xbf16>
    %c0_3 = arith.constant 0 : index
    %c0_4 = arith.constant 0 : index
    %4 = vector.load %arg3[%c0_3, %c0_4] : memref<128x256xbf16, #tpu.memory_space<vmem>>, vector<128x256xbf16>
    %cst = arith.constant dense<0.000000e+00> : vector<1x256xf32>
    %5 = tpu.matmul %3, %4, %cst {dimension_numbers = #tpu.dot_dimension_numbers<[1], [0], [0], [1], [0, 0, 1, 1], [], []>} : vector<1x128xbf16>, vector<128x256xbf16>, vector<1x256xf32> -> vector<1x256xf32>
    %c0_5 = arith.constant 0 : index
    %c0_6 = arith.constant 0 : index
    %6 = vector.load %arg4[%c0_5, %c0_6] : memref<1x256xf32, #tpu.memory_space<vmem>>, vector<1x256xf32>
    %7 = arith.addf %5, %6 : vector<1x256xf32>
    %cst_7 = arith.constant 0.000000e+00 : f32
    %8 = vector.broadcast %cst_7 : f32 to vector<1x256xf32>
    %9 = arith.maximumf %7, %8 : vector<1x256xf32>
    %10 = arith.truncf %9 : vector<1x256xf32> to vector<1x256xbf16>
    %c0_8 = arith.constant 0 : index
    %c0_9 = arith.constant 0 : index
    %11 = vector.load %arg5[%c0_8, %c0_9] : memref<256x256xbf16, #tpu.memory_space<vmem>>, vector<256x256xbf16>
    %cst_10 = arith.constant dense<0.000000e+00> : vector<1x256xf32>
    %12 = tpu.matmul %10, %11, %cst_10 {dimension_numbers = #tpu.dot_dimension_numbers<[1], [0], [0], [1], [0, 0, 1, 1], [], []>} : vector<1x256xbf16>, vector<256x256xbf16>, vector<1x256xf32> -> vector<1x256xf32>
    %c0_11 = arith.constant 0 : index
    %c0_12 = arith.constant 0 : index
    %13 = vector.load %arg6[%c0_11, %c0_12] : memref<1x256xf32, #tpu.memory_space<vmem>>, vector<1x256xf32>
    %14 = arith.addf %12, %13 : vector<1x256xf32>
    %cst_13 = arith.constant 0.000000e+00 : f32
    %15 = vector.broadcast %cst_13 : f32 to vector<1x256xf32>
    %16 = arith.maximumf %14, %15 : vector<1x256xf32>
    %17 = arith.truncf %16 : vector<1x256xf32> to vector<1x256xbf16>
    %c0_14 = arith.constant 0 : index
    %c0_15 = arith.constant 0 : index
    %18 = vector.load %arg7[%c0_14, %c0_15] : memref<256x128xbf16, #tpu.memory_space<vmem>>, vector<256x128xbf16>
    %cst_16 = arith.constant dense<0.000000e+00> : vector<1x128xf32>
    %19 = tpu.matmul %17, %18, %cst_16 {dimension_numbers = #tpu.dot_dimension_numbers<[1], [0], [0], [1], [0, 0, 1, 1], [], []>} : vector<1x256xbf16>, vector<256x128xbf16>, vector<1x128xf32> -> vector<1x128xf32>
    %c0_17 = arith.constant 0 : index
    %c0_18 = arith.constant 0 : index
    %20 = vector.load %arg8[%c0_17, %c0_18] : memref<1x128xf32, #tpu.memory_space<vmem>>, vector<1x128xf32>
    %21 = arith.addf %19, %20 : vector<1x128xf32>
    %22 = arith.mulf %21, %1 : vector<1x128xf32>
    %cst_19 = arith.constant 0.000000e+00 : f32
    %23 = vector.broadcast %cst_19 : f32 to vector<1x128xf32>
    %24 = arith.cmpf oeq, %22, %23 : vector<1x128xf32>
    %cst_20 = arith.constant -1.000000e+20 : f32
    %25 = vector.broadcast %cst_20 : f32 to vector<1x128xf32>
    %26 = arith.select %24, %25, %22 : vector<1x128xi1>, vector<1x128xf32>
    %c0_21 = arith.constant 0 : index
    %c0_22 = arith.constant 0 : index
    %27 = vector.load %arg9[%c0_21, %c0_22] : memref<1x128xf32, #tpu.memory_space<vmem>>, vector<1x128xf32>
    tpu.vector_store %arg9[%c0_21, %c0_22], %26 {strides = array<i32>} : memref<1x128xf32, #tpu.memory_space<vmem>>, vector<1x128xf32>,
    return
  }
  func.func @transform_0(%arg0: i32) -> (i32, i32) {
    %c0_i32 = arith.constant 0 : i32
    %c0_i32_0 = arith.constant 0 : i32
    return %arg0, %c0_i32 : i32, i32
  }
  func.func @transform_1(%arg0: i32) -> (i32, i32) {
    %c0_i32 = arith.constant 0 : i32
    %c0_i32_0 = arith.constant 0 : i32
    return %arg0, %c0_i32 : i32, i32
  }
  func.func @transform_2(%arg0: i32) -> (i32, i32) {
    %c0_i32 = arith.constant 0 : i32
    %c0_i32_0 = arith.constant 0 : i32
    %c0_i32_1 = arith.constant 0 : i32
    return %c0_i32, %c0_i32_0 : i32, i32
  }
  func.func @transform_3(%arg0: i32) -> (i32, i32) {
    %c0_i32 = arith.constant 0 : i32
    %c0_i32_0 = arith.constant 0 : i32
    %c0_i32_1 = arith.constant 0 : i32
    return %c0_i32, %c0_i32_0 : i32, i32
  }
  func.func @transform_4(%arg0: i32) -> (i32, i32) {
    %c0_i32 = arith.constant 0 : i32
    %c0_i32_0 = arith.constant 0 : i32
    %c0_i32_1 = arith.constant 0 : i32
    return %c0_i32, %c0_i32_0 : i32, i32
  }
  func.func @transform_5(%arg0: i32) -> (i32, i32) {
    %c0_i32 = arith.constant 0 : i32
    %c0_i32_0 = arith.constant 0 : i32
    %c0_i32_1 = arith.constant 0 : i32
    return %c0_i32, %c0_i32_0 : i32, i32
  }
  func.func @transform_6(%arg0: i32) -> (i32, i32) {
    %c0_i32 = arith.constant 0 : i32
    %c0_i32_0 = arith.constant 0 : i32
    %c0_i32_1 = arith.constant 0 : i32
    return %c0_i32, %c0_i32_0 : i32, i32
  }
  func.func @transform_7(%arg0: i32) -> (i32, i32) {
    %c0_i32 = arith.constant 0 : i32
    %c0_i32_0 = arith.constant 0 : i32
    %c0_i32_1 = arith.constant 0 : i32
    return %c0_i32, %c0_i32_0 : i32, i32
  }
  func.func @transform_8(%arg0: i32) -> (i32, i32) {
    %c0_i32 = arith.constant 0 : i32
    %c0_i32_0 = arith.constant 0 : i32
    return %arg0, %c0_i32 : i32, i32
  }
}

</mosaic_0001>

<llo_original>
// kernel: tpu_custom_call.1
$region0: #{tpu_custom_call.1}
  #allocation0 [shape = 'u32[]', space=smem, size = 0x4, offset = 0x4, fixed_abs, tag = 'smem constant byte address 0x4 - core index']
  #allocation1 [shape = 'u32[144,128]{1,0:T(1,128)}', space=vmem, size = 0x12000, scoped, tag = 'internal scratch']
  %s0 = inlined_call_operand.hbm [shape: f32[1,128], index: 0, kind: input, shape index: {}]
  %s1 = inlined_call_operand.vmem [shape: f32[1,128], index: 1, kind: input, shape index: {}]
  %s2 = inlined_call_operand.hbm [shape: bf16[128,256], index: 2, kind: input, shape index: {}]
  %s3 = inlined_call_operand.vmem [shape: f32[1,256], index: 3, kind: input, shape index: {}]
  %s4 = inlined_call_operand.hbm [shape: bf16[256,256], index: 4, kind: input, shape index: {}]
  %s5 = inlined_call_operand.vmem [shape: f32[1,256], index: 5, kind: input, shape index: {}]
  %s6 = inlined_call_operand.hbm [shape: bf16[256,128], index: 6, kind: input, shape index: {}]
  %s7 = inlined_call_operand.vmem [shape: f32[1,128], index: 7, kind: input, shape index: {}]
  %s8 = inlined_call_operand.hbm [shape: f32[1,128], index: 8, kind: output, shape index: {}]
  %s9 = sld [smem:[#allocation0]]
  $region58: #{tpu_custom_call.1} parent=0
    _
  %s11 = ssub.s32 1, %s9
  %s12 = scalar_select 0, %s11, %s9
  $region1: #{tpu_custom_call.1} parent=0
    #allocation2 [shape = 'u8[512]{0}', space=vmem, size = 0x400, scoped, tag = 'input window, operand 0, single buffered']
    #allocation3 [shape = 's32[1]{0}', space=sflag, size = 0x4, scoped, tag = 'scoped memory for tpu_custom_call.1']
    #allocation4 [shape = 's32[1]{0}', space=sflag, size = 0x4, scoped, tag = 'scoped memory for tpu_custom_call.1']
    #allocation5 [shape = 'u8[65536]{0}', space=vmem, size = 0x10000, scoped, tag = 'input window, operand 2, single buffered']
    #allocation6 [shape = 's32[1]{0}', space=sflag, size = 0x4, scoped, tag = 'scoped memory for tpu_custom_call.1']
    #allocation7 [shape = 'u8[131072]{0}', space=vmem, size = 0x20000, scoped, tag = 'input window, operand 4, single buffered']
    #allocation8 [shape = 'u8[65536]{0}', space=vmem, size = 0x10000, scoped, tag = 'input window, operand 6, single buffered']
    #allocation9 [shape = 's32[1]{0}', space=sflag, size = 0x4, scoped, tag = 'scoped memory for tpu_custom_call.1']
    #allocation10 [shape = 'u8[512]{0}', space=vmem, size = 0x400, scoped, tag = 'output window, operand 0, single buffered']
    %13 = vsyncpa [#allocation3], 0
    %14 = vsyncpa [#allocation6], 0
    %15 = vsyncpa [#allocation9], 0
    %16 = vsyncpa [#allocation4], 0
    // Predicated region
    $region2: #{tpu_custom_call.1} parent=1 // pred_check
      _
    $region3: #{tpu_custom_call.1} parent=1 // pred_check_branch
      %18 = sbr.rel (0) target = $region5
    $region4: #{tpu_custom_call.1} parent=1 // pred_region
      %s20 = ssub.s32 16, 16
      %21 = vsyncadd [#allocation3], %s20
      %s23 = sshll.u32 [#allocation2], 4
      %s24 = int_to_ptr.vmem [resolvable:$true] %s23
      %26 = dma.hbm_to_vmem [thread:$0]  %s0, 16, %s24, [#allocation3]
    $region5: #{tpu_custom_call.1} parent=1 // pred_fallthru
      _
    // Predicated region
    $region6: #{tpu_custom_call.1} parent=1 // pred_check
      _
    $region7: #{tpu_custom_call.1} parent=1 // pred_check_branch
      %28 = sbr.rel (0) target = $region9
    $region8: #{tpu_custom_call.1} parent=1 // pred_region
      _
    $region9: #{tpu_custom_call.1} parent=1 // pred_fallthru
      _
    // Predicated region
    $region10: #{tpu_custom_call.1} parent=1 // pred_check
      _
    $region11: #{tpu_custom_call.1} parent=1 // pred_check_branch
      %30 = sbr.rel (0) target = $region13
    $region12: #{tpu_custom_call.1} parent=1 // pred_region
      %s32 = ssub.s32 2048, 2048
      %33 = vsyncadd [#allocation6], %s32
      %s34 = sshll.u32 [#allocation5], 4
      %s35 = int_to_ptr.vmem [resolvable:$true] %s34
      %40 = dma.hbm_to_vmem [thread:$0]  %s2, 2048, %s35, [#allocation6], 128, 128, 8
    $region13: #{tpu_custom_call.1} parent=1 // pred_fallthru
      _
    // Predicated region
    $region14: #{tpu_custom_call.1} parent=1 // pred_check
      _
    $region15: #{tpu_custom_call.1} parent=1 // pred_check_branch
      %42 = sbr.rel (0) target = $region17
    $region16: #{tpu_custom_call.1} parent=1 // pred_region
      _
    $region17: #{tpu_custom_call.1} parent=1 // pred_fallthru
      _
    // Predicated region
    $region18: #{tpu_custom_call.1} parent=1 // pred_check
      _
    $region19: #{tpu_custom_call.1} parent=1 // pred_check_branch
      %44 = sbr.rel (0) target = $region21
    $region20: #{tpu_custom_call.1} parent=1 // pred_region
      %s46 = ssub.s32 4096, 4096
      %47 = vsyncadd [#allocation6], %s46
      %s48 = sshll.u32 [#allocation7], 4
      %s49 = int_to_ptr.vmem [resolvable:$true] %s48
      %54 = dma.hbm_to_vmem [thread:$0]  %s4, 4096, %s49, [#allocation6], 128, 128, 8
    $region21: #{tpu_custom_call.1} parent=1 // pred_fallthru
      _
    // Predicated region
    $region22: #{tpu_custom_call.1} parent=1 // pred_check
      _
    $region23: #{tpu_custom_call.1} parent=1 // pred_check_branch
      %56 = sbr.rel (0) target = $region25
    $region24: #{tpu_custom_call.1} parent=1 // pred_region
      _
    $region25: #{tpu_custom_call.1} parent=1 // pred_fallthru
      _
    // Predicated region
    $region26: #{tpu_custom_call.1} parent=1 // pred_check
      _
    $region27: #{tpu_custom_call.1} parent=1 // pred_check_branch
      %58 = sbr.rel (0) target = $region29
    $region28: #{tpu_custom_call.1} parent=1 // pred_region
      %s60 = ssub.s32 2048, 2048
      %61 = vsyncadd [#allocation9], %s60
      %s62 = sshll.u32 [#allocation8], 4
      %s63 = int_to_ptr.vmem [resolvable:$true] %s62
      %68 = dma.hbm_to_vmem [thread:$0]  %s6, 2048, %s63, [#allocation9], 64, 64, 4
    $region29: #{tpu_custom_call.1} parent=1 // pred_fallthru
      _
    // Predicated region
    $region30: #{tpu_custom_call.1} parent=1 // pred_check
      _
    $region31: #{tpu_custom_call.1} parent=1 // pred_check_branch
      %70 = sbr.rel (0) target = $region33
    $region32: #{tpu_custom_call.1} parent=1 // pred_region
      _
    $region33: #{tpu_custom_call.1} parent=1 // pred_fallthru
      _
    // Predicated region
    $region34: #{tpu_custom_call.1} parent=1 // pred_check
      _
    $region35: #{tpu_custom_call.1} parent=1 // pred_check_branch
      %72 = sbr.rel (0) target = $region37
    $region36: #{tpu_custom_call.1} parent=1 // pred_region
      %73 = dma.done [#allocation3], 16
    $region37: #{tpu_custom_call.1} parent=1 // pred_fallthru
      _
    // Predicated region
    $region38: #{tpu_custom_call.1} parent=1 // pred_check
      _
    $region39: #{tpu_custom_call.1} parent=1 // pred_check_branch
      %75 = sbr.rel (0) target = $region41
    $region40: #{tpu_custom_call.1} parent=1 // pred_region
      %76 = dma.done [#allocation6], 2048
    $region41: #{tpu_custom_call.1} parent=1 // pred_fallthru
      _
    // Predicated region
    $region42: #{tpu_custom_call.1} parent=1 // pred_check
      _
    $region43: #{tpu_custom_call.1} parent=1 // pred_check_branch
      %78 = sbr.rel (0) target = $region45
    $region44: #{tpu_custom_call.1} parent=1 // pred_region
      %79 = dma.done [#allocation6], 4096
    $region45: #{tpu_custom_call.1} parent=1 // pred_fallthru
      _
    // Predicated region
    $region46: #{tpu_custom_call.1} parent=1 // pred_check
      _
    $region47: #{tpu_custom_call.1} parent=1 // pred_check_branch
      %81 = sbr.rel (0) target = $region49
    $region48: #{tpu_custom_call.1} parent=1 // pred_region
      %82 = dma.done [#allocation9], 2048
    $region49: #{tpu_custom_call.1} parent=1 // pred_fallthru
      _
    %v84 = vld [vmem:[#allocation2] sm:$0x1]
    %v85 = vld [vmem:[%s1] sm:$0x1]
    %v86 = vmul.f32 %v84, %v85
    %v87 = vpack.c.bf16 %v86, %v86
    %v88 = vld [vmem:[#allocation5] sm:$0xff]
    %v89 = vld [vmem:[#allocation5 + $0x8] sm:$0xff]
    %v90 = vld [vmem:[#allocation5 + $0x10] sm:$0xff]
    %v91 = vld [vmem:[#allocation5 + $0x18] sm:$0xff]
    %v92 = vld [vmem:[#allocation5 + $0x20] sm:$0xff]
    %v93 = vld [vmem:[#allocation5 + $0x28] sm:$0xff]
    %v94 = vld [vmem:[#allocation5 + $0x30] sm:$0xff]
    %v95 = vld [vmem:[#allocation5 + $0x38] sm:$0xff]
    %v96 = vld [vmem:[#allocation5 + $0x40] sm:$0xff]
    %v97 = vld [vmem:[#allocation5 + $0x48] sm:$0xff]
    %v98 = vld [vmem:[#allocation5 + $0x50] sm:$0xff]
    %v99 = vld [vmem:[#allocation5 + $0x58] sm:$0xff]
    %v100 = vld [vmem:[#allocation5 + $0x60] sm:$0xff]
    %v101 = vld [vmem:[#allocation5 + $0x68] sm:$0xff]
    %v102 = vld [vmem:[#allocation5 + $0x70] sm:$0xff]
    %v103 = vld [vmem:[#allocation5 + $0x78] sm:$0xff]
    %v104 = vld [vmem:[%s3] sm:$0x3]
    %v121 = vunpack.c.l.b16 %v88
    %v122 = vunpack.c.h.b16 %v88
    %v123 = vunpack.c.l.b16 %v89
    %v124 = vunpack.c.h.b16 %v89
    %v125 = vunpack.c.l.b16 %v90
    %v126 = vunpack.c.h.b16 %v90
    %v127 = vunpack.c.l.b16 %v91
    %v128 = vunpack.c.h.b16 %v91
    %v129 = vunpack.c.l.b16 %v92
    %v130 = vunpack.c.h.b16 %v92
    %v131 = vunpack.c.l.b16 %v93
    %v132 = vunpack.c.h.b16 %v93
    %v133 = vunpack.c.l.b16 %v94
    %v134 = vunpack.c.h.b16 %v94
    %v135 = vunpack.c.l.b16 %v95
    %v136 = vunpack.c.h.b16 %v95
    %v137 = vunpack.c.l.b16 %v96
    %v138 = vunpack.c.h.b16 %v96
    %v139 = vunpack.c.l.b16 %v97
    %v140 = vunpack.c.h.b16 %v97
    %v141 = vunpack.c.l.b16 %v98
    %v142 = vunpack.c.h.b16 %v98
    %v143 = vunpack.c.l.b16 %v99
    %v144 = vunpack.c.h.b16 %v99
    %v145 = vunpack.c.l.b16 %v100
    %v146 = vunpack.c.h.b16 %v100
    %v147 = vunpack.c.l.b16 %v101
    %v148 = vunpack.c.h.b16 %v101
    %v149 = vunpack.c.l.b16 %v102
    %v150 = vunpack.c.h.b16 %v102
    %v151 = vunpack.c.l.b16 %v103
    %v152 = vunpack.c.h.b16 %v103
    %v153 = vpack.c.b16 %v123, %v121
    %v154 = vpack.c.b16 %v124, %v122
    %v155 = vpack.c.b16 %v127, %v125
    %v156 = vpack.c.b16 %v128, %v126
    %v157 = vpack.c.b16 %v131, %v129
    %v158 = vpack.c.b16 %v132, %v130
    %v159 = vpack.c.b16 %v135, %v133
    %v160 = vpack.c.b16 %v136, %v134
    %v161 = vpack.c.b16 %v139, %v137
    %v162 = vpack.c.b16 %v140, %v138
    %v163 = vpack.c.b16 %v143, %v141
    %v164 = vpack.c.b16 %v144, %v142
    %v165 = vpack.c.b16 %v147, %v145
    %v166 = vpack.c.b16 %v148, %v146
    %v167 = vpack.c.b16 %v151, %v149
    %v168 = vpack.c.b16 %v152, %v150
    %v186 = vlaneseq
    %v187 = vshrl.u32 %v186, 7
    %v188 = vsub.s32 0, %v187
    %v189 = vrot.slane %v104, %v188
    %v190 = vlaneseq
    %v191 = vshrl.u32 %v190, 7
    %v192 = vsub.s32 1, %v191
    %v193 = vrot.slane %v104, %v192
    %196 = vmatprep.subr.bf16.mxu0 %v154
    %197 = vmatpush1.bf16.msra.mxu0 %v153
    %198 = vmatprep.subr.bf16.mxu0 %v156
    %199 = vmatpush1.bf16.msra.mxu0 %v155
    %200 = vmatprep.subr.bf16.mxu0 %v158
    %201 = vmatpush1.bf16.msra.mxu0 %v157
    %202 = vmatprep.subr.bf16.mxu0 %v160
    %203 = vmatpush1.bf16.msra.mxu0 %v159
    %204 = vmatprep.subr.bf16.mxu0 %v162
    %205 = vmatpush1.bf16.msra.mxu0 %v161
    %206 = vmatprep.subr.bf16.mxu0 %v164
    %207 = vmatpush1.bf16.msra.mxu0 %v163
    %208 = vmatprep.subr.bf16.mxu0 %v166
    %209 = vmatpush1.bf16.msra.mxu0 %v165
    %210 = vmatprep.subr.bf16.mxu0 %v168
    %211 = vmatpush1.bf16.msra.mxu0 %v167
    %212 = vmatprep.subr.bf16.mxu0 0
    %213 = vmatpush1.bf16.msra.mxu0 0
    %214 = vmatprep.subr.bf16.mxu0 0
    %215 = vmatpush1.bf16.msra.mxu0 0
    %216 = vmatprep.subr.bf16.mxu0 0
    %217 = vmatpush1.bf16.msra.mxu0 0
    %218 = vmatprep.subr.bf16.mxu0 0
    %219 = vmatpush1.bf16.msra.mxu0 0
    %220 = vmatprep.subr.bf16.mxu0 0
    %221 = vmatpush1.bf16.msra.mxu0 0
    %222 = vmatprep.subr.bf16.mxu0 0
    %223 = vmatpush1.bf16.msra.mxu0 0
    %224 = vmatprep.subr.bf16.mxu0 0
    %225 = vmatpush1.bf16.msra.mxu0 0
    %226 = vmatprep.subr.bf16.mxu0 0
    %227 = vmatpush1.bf16.msra.mxu0 0
    %228 = vmatprep.mubr.bf16.mxu0 0
    %229 = vmatmul.mubr.bf16.gmra.mrb[0].mxu0 %v87
    %v230 = vpop.f32.mrb[0].mxu0
    %v231 = vadd.f32 %v189, %v230
    %v232 = vpop.f32.mrb[0].mxu0
    %v233 = vadd.f32 %v193, %v232
    %v234 = vpop.f32.mrb[0].mxu0
    %v235 = vpop.f32.mrb[0].mxu0
    %236 = vdwg.mxu0
    %v237 = vmax.f32 %v231, 0.0
    %v238 = vmax.f32 %v233, 0.0
    %v239 = vpack.c.bf16 %v237, %v237
    %v240 = vpack.c.bf16 %v238, %v238
    %v241 = vld [vmem:[#allocation7] sm:$0xff]
    %v242 = vld [vmem:[#allocation7 + $0x8] sm:$0xff]
    %v243 = vld [vmem:[#allocation7 + $0x10] sm:$0xff]
    %v244 = vld [vmem:[#allocation7 + $0x18] sm:$0xff]
    %v245 = vld [vmem:[#allocation7 + $0x20] sm:$0xff]
    %v246 = vld [vmem:[#allocation7 + $0x28] sm:$0xff]
    %v247 = vld [vmem:[#allocation7 + $0x30] sm:$0xff]
    %v248 = vld [vmem:[#allocation7 + $0x38] sm:$0xff]
    %v249 = vld [vmem:[#allocation7 + $0x40] sm:$0xff]
    %v250 = vld [vmem:[#allocation7 + $0x48] sm:$0xff]
    %v251 = vld [vmem:[#allocation7 + $0x50] sm:$0xff]
    %v252 = vld [vmem:[#allocation7 + $0x58] sm:$0xff]
    %v253 = vld [vmem:[#allocation7 + $0x60] sm:$0xff]
    %v254 = vld [vmem:[#allocation7 + $0x68] sm:$0xff]
    %v255 = vld [vmem:[#allocation7 + $0x70] sm:$0xff]
    %v256 = vld [vmem:[#allocation7 + $0x78] sm:$0xff]
    %v257 = vld [vmem:[#allocation7 + $0x80] sm:$0xff]
    %v258 = vld [vmem:[#allocation7 + $0x88] sm:$0xff]
    %v259 = vld [vmem:[#allocation7 + $0x90] sm:$0xff]
    %v260 = vld [vmem:[#allocation7 + $0x98] sm:$0xff]
    %v261 = vld [vmem:[#allocation7 + $0xa0] sm:$0xff]
    %v262 = vld [vmem:[#allocation7 + $0xa8] sm:$0xff]
    %v263 = vld [vmem:[#allocation7 + $0xb0] sm:$0xff]
    %v264 = vld [vmem:[#allocation7 + $0xb8] sm:$0xff]
    %v265 = vld [vmem:[#allocation7 + $0xc0] sm:$0xff]
    %v266 = vld [vmem:[#allocation7 + $0xc8] sm:$0xff]
    %v267 = vld [vmem:[#allocation7 + $0xd0] sm:$0xff]
    %v268 = vld [vmem:[#allocation7 + $0xd8] sm:$0xff]
    %v269 = vld [vmem:[#allocation7 + $0xe0] sm:$0xff]
    %v270 = vld [vmem:[#allocation7 + $0xe8] sm:$0xff]
    %v271 = vld [vmem:[#allocation7 + $0xf0] sm:$0xff]
    %v272 = vld [vmem:[#allocation7 + $0xf8] sm:$0xff]
    %v273 = vld [vmem:[%s5] sm:$0x3]
    %v306 = vunpack.c.l.b16 %v241
    %v307 = vunpack.c.h.b16 %v241
    %v308 = vunpack.c.l.b16 %v242
    %v309 = vunpack.c.h.b16 %v242
    %v310 = vunpack.c.l.b16 %v243
    %v311 = vunpack.c.h.b16 %v243
    %v312 = vunpack.c.l.b16 %v244
    %v313 = vunpack.c.h.b16 %v244
    %v314 = vunpack.c.l.b16 %v245
    %v315 = vunpack.c.h.b16 %v245
    %v316 = vunpack.c.l.b16 %v246
    %v317 = vunpack.c.h.b16 %v246
    %v318 = vunpack.c.l.b16 %v247
    %v319 = vunpack.c.h.b16 %v247
    %v320 = vunpack.c.l.b16 %v248
    %v321 = vunpack.c.h.b16 %v248
    %v322 = vunpack.c.l.b16 %v249
    %v323 = vunpack.c.h.b16 %v249
    %v324 = vunpack.c.l.b16 %v250
    %v325 = vunpack.c.h.b16 %v250
    %v326 = vunpack.c.l.b16 %v251
    %v327 = vunpack.c.h.b16 %v251
    %v328 = vunpack.c.l.b16 %v252
    %v329 = vunpack.c.h.b16 %v252
    %v330 = vunpack.c.l.b16 %v253
    %v331 = vunpack.c.h.b16 %v253
    %v332 = vunpack.c.l.b16 %v254
    %v333 = vunpack.c.h.b16 %v254
    %v334 = vunpack.c.l.b16 %v255
    %v335 = vunpack.c.h.b16 %v255
    %v336 = vunpack.c.l.b16 %v256
    %v337 = vunpack.c.h.b16 %v256
    %v338 = vunpack.c.l.b16 %v257
    %v339 = vunpack.c.h.b16 %v257
    %v340 = vunpack.c.l.b16 %v258
    %v341 = vunpack.c.h.b16 %v258
    %v342 = vunpack.c.l.b16 %v259
    %v343 = vunpack.c.h.b16 %v259
    %v344 = vunpack.c.l.b16 %v260
    %v345 = vunpack.c.h.b16 %v260
    %v346 = vunpack.c.l.b16 %v261
    %v347 = vunpack.c.h.b16 %v261
    %v348 = vunpack.c.l.b16 %v262
    %v349 = vunpack.c.h.b16 %v262
    %v350 = vunpack.c.l.b16 %v263
    %v351 = vunpack.c.h.b16 %v263
    %v352 = vunpack.c.l.b16 %v264
    %v353 = vunpack.c.h.b16 %v264
    %v354 = vunpack.c.l.b16 %v265
    %v355 = vunpack.c.h.b16 %v265
    %v356 = vunpack.c.l.b16 %v266
    %v357 = vunpack.c.h.b16 %v266
    %v358 = vunpack.c.l.b16 %v267
    %v359 = vunpack.c.h.b16 %v267
    %v360 = vunpack.c.l.b16 %v268
    %v361 = vunpack.c.h.b16 %v268
    %v362 = vunpack.c.l.b16 %v269
    %v363 = vunpack.c.h.b16 %v269
    %v364 = vunpack.c.l.b16 %v270
    %v365 = vunpack.c.h.b16 %v270
    %v366 = vunpack.c.l.b16 %v271
    %v367 = vunpack.c.h.b16 %v271
    %v368 = vunpack.c.l.b16 %v272
    %v369 = vunpack.c.h.b16 %v272
    %v370 = vpack.c.b16 %v308, %v306
    %v371 = vpack.c.b16 %v309, %v307
    %v372 = vpack.c.b16 %v312, %v310
    %v373 = vpack.c.b16 %v313, %v311
    %v374 = vpack.c.b16 %v316, %v314
    %v375 = vpack.c.b16 %v317, %v315
    %v376 = vpack.c.b16 %v320, %v318
    %v377 = vpack.c.b16 %v321, %v319
    %v378 = vpack.c.b16 %v324, %v322
    %v379 = vpack.c.b16 %v325, %v323
    %v380 = vpack.c.b16 %v328, %v326
    %v381 = vpack.c.b16 %v329, %v327
    %v382 = vpack.c.b16 %v332, %v330
    %v383 = vpack.c.b16 %v333, %v331
    %v384 = vpack.c.b16 %v336, %v334
    %v385 = vpack.c.b16 %v337, %v335
    %v386 = vpack.c.b16 %v340, %v338
    %v387 = vpack.c.b16 %v341, %v339
    %v388 = vpack.c.b16 %v344, %v342
    %v389 = vpack.c.b16 %v345, %v343
    %v390 = vpack.c.b16 %v348, %v346
    %v391 = vpack.c.b16 %v349, %v347
    %v392 = vpack.c.b16 %v352, %v350
    %v393 = vpack.c.b16 %v353, %v351
    %v394 = vpack.c.b16 %v356, %v354
    %v395 = vpack.c.b16 %v357, %v355
    %v396 = vpack.c.b16 %v360, %v358
    %v397 = vpack.c.b16 %v361, %v359
    %v398 = vpack.c.b16 %v364, %v362
    %v399 = vpack.c.b16 %v365, %v363
    %v400 = vpack.c.b16 %v368, %v366
    %v401 = vpack.c.b16 %v369, %v367
    %v435 = vlaneseq
    %v436 = vshrl.u32 %v435, 7
    %v437 = vsub.s32 0, %v436
    %v438 = vrot.slane %v273, %v437
    %v439 = vlaneseq
    %v440 = vshrl.u32 %v439, 7
    %v441 = vsub.s32 1, %v440
    %v442 = vrot.slane %v273, %v441
    %445 = vmatprep.subr.bf16.mxu0 %v371
    %446 = vmatpush1.bf16.msra.mxu0 %v370
    %447 = vmatprep.subr.bf16.mxu0 %v373
    %448 = vmatpush1.bf16.msra.mxu0 %v372
    %449 = vmatprep.subr.bf16.mxu0 %v375
    %450 = vmatpush1.bf16.msra.mxu0 %v374
    %451 = vmatprep.subr.bf16.mxu0 %v377
    %452 = vmatpush1.bf16.msra.mxu0 %v376
    %453 = vmatprep.subr.bf16.mxu0 %v379
    %454 = vmatpush1.bf16.msra.mxu0 %v378
    %455 = vmatprep.subr.bf16.mxu0 %v381
    %456 = vmatpush1.bf16.msra.mxu0 %v380
    %457 = vmatprep.subr.bf16.mxu0 %v383
    %458 = vmatpush1.bf16.msra.mxu0 %v382
    %459 = vmatprep.subr.bf16.mxu0 %v385
    %460 = vmatpush1.bf16.msra.mxu0 %v384
    %461 = vmatprep.subr.bf16.mxu0 %v387
    %462 = vmatpush1.bf16.msra.mxu0 %v386
    %463 = vmatprep.subr.bf16.mxu0 %v389
    %464 = vmatpush1.bf16.msra.mxu0 %v388
    %465 = vmatprep.subr.bf16.mxu0 %v391
    %466 = vmatpush1.bf16.msra.mxu0 %v390
    %467 = vmatprep.subr.bf16.mxu0 %v393
    %468 = vmatpush1.bf16.msra.mxu0 %v392
    %469 = vmatprep.subr.bf16.mxu0 %v395
    %470 = vmatpush1.bf16.msra.mxu0 %v394
    %471 = vmatprep.subr.bf16.mxu0 %v397
    %472 = vmatpush1.bf16.msra.mxu0 %v396
    %473 = vmatprep.subr.bf16.mxu0 %v399
    %474 = vmatpush1.bf16.msra.mxu0 %v398
    %475 = vmatprep.subr.bf16.mxu0 %v401
    %476 = vmatpush1.bf16.msra.mxu0 %v400
    %477 = vmatprep.mubr.bf16.mxu0 %v240
    %478 = vmatmul.mubr.bf16.gmra.mrb[0].mxu0 %v239
    %v479 = vpop.f32.mrb[0].mxu0
    %v480 = vadd.f32 %v438, %v479
    %v481 = vpop.f32.mrb[0].mxu0
    %v482 = vadd.f32 %v442, %v481
    %v483 = vpop.f32.mrb[0].mxu0
    %v484 = vpop.f32.mrb[0].mxu0
    %485 = vdwg.mxu0
    %v486 = vmax.f32 %v480, 0.0
    %v487 = vmax.f32 %v482, 0.0
    %v488 = vpack.c.bf16 %v486, %v486
    %v489 = vpack.c.bf16 %v487, %v487
    %v490 = vld [vmem:[#allocation8] sm:$0xf]
    %v491 = vld [vmem:[#allocation8 + $0x4] sm:$0xf]
    %v492 = vld [vmem:[#allocation8 + $0x8] sm:$0xf]
    %v493 = vld [vmem:[#allocation8 + $0xc] sm:$0xf]
    %v494 = vld [vmem:[#allocation8 + $0x10] sm:$0xf]
    %v495 = vld [vmem:[#allocation8 + $0x14] sm:$0xf]
    %v496 = vld [vmem:[#allocation8 + $0x18] sm:$0xf]
    %v497 = vld [vmem:[#allocation8 + $0x1c] sm:$0xf]
    %v498 = vld [vmem:[#allocation8 + $0x20] sm:$0xf]
    %v499 = vld [vmem:[#allocation8 + $0x24] sm:$0xf]
    %v500 = vld [vmem:[#allocation8 + $0x28] sm:$0xf]
    %v501 = vld [vmem:[#allocation8 + $0x2c] sm:$0xf]
    %v502 = vld [vmem:[#allocation8 + $0x30] sm:$0xf]
    %v503 = vld [vmem:[#allocation8 + $0x34] sm:$0xf]
    %v504 = vld [vmem:[#allocation8 + $0x38] sm:$0xf]
    %v505 = vld [vmem:[#allocation8 + $0x3c] sm:$0xf]
    %v506 = vld [vmem:[#allocation8 + $0x40] sm:$0xf]
    %v507 = vld [vmem:[#allocation8 + $0x44] sm:$0xf]
    %v508 = vld [vmem:[#allocation8 + $0x48] sm:$0xf]
    %v509 = vld [vmem:[#allocation8 + $0x4c] sm:$0xf]
    %v510 = vld [vmem:[#allocation8 + $0x50] sm:$0xf]
    %v511 = vld [vmem:[#allocation8 + $0x54] sm:$0xf]
    %v512 = vld [vmem:[#allocation8 + $0x58] sm:$0xf]
    %v513 = vld [vmem:[#allocation8 + $0x5c] sm:$0xf]
    %v514 = vld [vmem:[#allocation8 + $0x60] sm:$0xf]
    %v515 = vld [vmem:[#allocation8 + $0x64] sm:$0xf]
    %v516 = vld [vmem:[#allocation8 + $0x68] sm:$0xf]
    %v517 = vld [vmem:[#allocation8 + $0x6c] sm:$0xf]
    %v518 = vld [vmem:[#allocation8 + $0x70] sm:$0xf]
    %v519 = vld [vmem:[#allocation8 + $0x74] sm:$0xf]
    %v520 = vld [vmem:[#allocation8 + $0x78] sm:$0xf]
    %v521 = vld [vmem:[#allocation8 + $0x7c] sm:$0xf]
    %v522 = vld [vmem:[%s7] sm:$0x1]
    %v555 = vunpack.c.l.b16 %v490
    %v556 = vunpack.c.l.b16 %v491
    %v557 = vunpack.c.l.b16 %v492
    %v558 = vunpack.c.l.b16 %v493
    %v559 = vunpack.c.l.b16 %v494
    %v560 = vunpack.c.l.b16 %v495
    %v561 = vunpack.c.l.b16 %v496
    %v562 = vunpack.c.l.b16 %v497
    %v563 = vunpack.c.l.b16 %v498
    %v564 = vunpack.c.l.b16 %v499
    %v565 = vunpack.c.l.b16 %v500
    %v566 = vunpack.c.l.b16 %v501
    %v567 = vunpack.c.l.b16 %v502
    %v568 = vunpack.c.l.b16 %v503
    %v569 = vunpack.c.l.b16 %v504
    %v570 = vunpack.c.l.b16 %v505
    %v571 = vunpack.c.l.b16 %v506
    %v572 = vunpack.c.l.b16 %v507
    %v573 = vunpack.c.l.b16 %v508
    %v574 = vunpack.c.l.b16 %v509
    %v575 = vunpack.c.l.b16 %v510
    %v576 = vunpack.c.l.b16 %v511
    %v577 = vunpack.c.l.b16 %v512
    %v578 = vunpack.c.l.b16 %v513
    %v579 = vunpack.c.l.b16 %v514
    %v580 = vunpack.c.l.b16 %v515
    %v581 = vunpack.c.l.b16 %v516
    %v582 = vunpack.c.l.b16 %v517
    %v583 = vunpack.c.l.b16 %v518
    %v584 = vunpack.c.l.b16 %v519
    %v585 = vunpack.c.l.b16 %v520
    %v586 = vunpack.c.l.b16 %v521
    %v587 = vpack.c.b16 %v556, %v555
    %v588 = vpack.c.b16 %v558, %v557
    %v589 = vpack.c.b16 %v560, %v559
    %v590 = vpack.c.b16 %v562, %v561
    %v591 = vpack.c.b16 %v564, %v563
    %v592 = vpack.c.b16 %v566, %v565
    %v593 = vpack.c.b16 %v568, %v567
    %v594 = vpack.c.b16 %v570, %v569
    %v595 = vpack.c.b16 %v572, %v571
    %v596 = vpack.c.b16 %v574, %v573
    %v597 = vpack.c.b16 %v576, %v575
    %v598 = vpack.c.b16 %v578, %v577
    %v599 = vpack.c.b16 %v580, %v579
    %v600 = vpack.c.b16 %v582, %v581
    %v601 = vpack.c.b16 %v584, %v583
    %v602 = vpack.c.b16 %v586, %v585
    %619 = vmatprep.subr.bf16.mxu0 0
    %620 = vmatpush1.bf16.msra.mxu0 %v587
    %621 = vmatprep.subr.bf16.mxu0 0
    %622 = vmatpush1.bf16.msra.mxu0 %v588
    %623 = vmatprep.subr.bf16.mxu0 0
    %624 = vmatpush1.bf16.msra.mxu0 %v589
    %625 = vmatprep.subr.bf16.mxu0 0
    %626 = vmatpush1.bf16.msra.mxu0 %v590
    %627 = vmatprep.subr.bf16.mxu0 0
    %628 = vmatpush1.bf16.msra.mxu0 %v591
    %629 = vmatprep.subr.bf16.mxu0 0
    %630 = vmatpush1.bf16.msra.mxu0 %v592
    %631 = vmatprep.subr.bf16.mxu0 0
    %632 = vmatpush1.bf16.msra.mxu0 %v593
    %633 = vmatprep.subr.bf16.mxu0 0
    %634 = vmatpush1.bf16.msra.mxu0 %v594
    %635 = vmatprep.subr.bf16.mxu0 0
    %636 = vmatpush1.bf16.msra.mxu0 %v595
    %637 = vmatprep.subr.bf16.mxu0 0
    %638 = vmatpush1.bf16.msra.mxu0 %v596
    %639 = vmatprep.subr.bf16.mxu0 0
    %640 = vmatpush1.bf16.msra.mxu0 %v597
    %641 = vmatprep.subr.bf16.mxu0 0
    %642 = vmatpush1.bf16.msra.mxu0 %v598
    %643 = vmatprep.subr.bf16.mxu0 0
    %644 = vmatpush1.bf16.msra.mxu0 %v599
    %645 = vmatprep.subr.bf16.mxu0 0
    %646 = vmatpush1.bf16.msra.mxu0 %v600
    %647 = vmatprep.subr.bf16.mxu0 0
    %648 = vmatpush1.bf16.msra.mxu0 %v601
    %649 = vmatprep.subr.bf16.mxu0 0
    %650 = vmatpush1.bf16.msra.mxu0 %v602
    %651 = vmatprep.mubr.bf16.mxu0 %v489
    %652 = vmatmul.mubr.bf16.gmra.mrb[0].mxu0 %v488
    %v653 = vpop.f32.mrb[0].mxu0
    %v654 = vadd.f32 %v522, %v653
    %v655 = vpop.f32.mrb[0].mxu0
    %v656 = vpop.f32.mrb[0].mxu0
    %v657 = vpop.f32.mrb[0].mxu0
    %658 = vdwg.mxu0
    %v659 = vmul.f32 %v654, %v85
    %vm660 = vcmp.eq.f32.partialorder %v659, 0.0
    %v661 = vsel %vm660, -1e+20, %v659
    %662 = vst [vmem:[#allocation10] sm:$0x1] %v661
    // Predicated region
    $region50: #{tpu_custom_call.1} parent=1 // pred_check
      _
    $region51: #{tpu_custom_call.1} parent=1 // pred_check_branch
      %664 = sbr.rel (0) target = $region53
    $region52: #{tpu_custom_call.1} parent=1 // pred_region
      %s666 = ssub.s32 16, 16
      %667 = vsyncadd [#allocation4], %s666
      %s669 = sshll.u32 [#allocation10], 4
      %s670 = int_to_ptr.vmem [resolvable:$true] %s669
      %672 = dma.vmem_to_hbm [thread:$0]  %s670, 16, %s8, [#allocation4]
    $region53: #{tpu_custom_call.1} parent=1 // pred_fallthru
      _
    // Predicated region
    $region54: #{tpu_custom_call.1} parent=1 // pred_check
      _
    $region55: #{tpu_custom_call.1} parent=1 // pred_check_branch
      %674 = sbr.rel (0) target = $region57
    $region56: #{tpu_custom_call.1} parent=1 // pred_region
      %675 = dma.done [#allocation4], 16
    $region57: #{tpu_custom_call.1} parent=1 // pred_fallthru
      _
    %676 = vsyncpa [#allocation3], 1
    %677 = vsyncpa [#allocation6], 1
    %678 = vsyncpa [#allocation9], 1
    %679 = vsyncpa [#allocation4], 1

</llo_original>
